<compile_context>
chip_gen: v7x
topology: tpu7x:2x2x1
jax: 0.10.0
libtpu: 0.0.40
codegen_flags: <defaults>
</compile_context>

<pallas_src>
import functools

import jax
import jax.numpy as jnp
from jax.experimental import pallas as pl
from jax.experimental.pallas import tpu as pltpu


def _soft_ce_kernel(x_ref, t_ref, loss_ref):
    """Per-tile: stable log_softmax over classes + soft-target weighted row sum."""
    x = x_ref[...].astype(jnp.float32)          # (tile_rows, C)
    t = t_ref[...].astype(jnp.float32)          # (tile_rows, C)

    m = jnp.max(x, axis=-1, keepdims=True)
    shifted = x - m
    lse = jnp.log(jnp.sum(jnp.exp(shifted), axis=-1, keepdims=True))
    logp = shifted - lse                        # (tile_rows, C)

    loss_ref[...] = jnp.sum(-t * logp, axis=-1, keepdims=True)   # (tile_rows, 1)


def _round_up(n, m):
    return -(-n // m) * m


def _default_vmem_limit():
    """Scoped-VMEM request: generous on v5e/v6e (128 MiB), safe on v7x (64 MiB)."""
    try:
        cap = pltpu.get_tpu_info().vmem_capacity_bytes
    except Exception:
        cap = 64 << 20            # conservative fallback (v7x per-TC VMEM)
    return min(int(cap * 3 // 4), 96 << 20)


def _pick_tile_rows(n_rows, n_cols, x_isz, t_isz, row_mult, vmem_limit):
    """Largest row tile whose double-buffered inputs + f32 temps fit the budget."""
    # per-row bytes: 2 pipeline buffers of each input block + ~3 f32 temporaries
    bytes_per_row = n_cols * (2 * (x_isz + t_isz) + 3 * 4)
    budget = int(vmem_limit * 0.6)
    t = (budget // max(bytes_per_row, 1)) // row_mult * row_mult
    t = max(t, row_mult)
    t = min(t, 1024)                          # diminishing returns past ~1024 rows
    t = min(t, _round_up(n_rows, row_mult))   # never bigger than (padded) N
    return max(t, row_mult)


@functools.partial(jax.jit, static_argnames=("reduction", "tile_rows"))
def soft_target_cross_entropy(x, target, reduction="mean", tile_rows=None):
    if x.ndim != 2 or target.shape != x.shape:
        raise ValueError("expected x and target with identical (N, C) shapes")
    N, C = x.shape

    x_isz = jnp.dtype(x.dtype).itemsize
    t_isz = jnp.dtype(target.dtype).itemsize
    # Sub-32-bit dtypes pack along sublanes -> keep row tiles at their packing
    # multiple (16 for bf16, 32 for int8/fp8); 8 for f32.
    row_mult = max(8, 32 // max(1, min(x_isz, t_isz)))

    vmem_limit = _default_vmem_limit()
    if tile_rows is None:
        tile_rows = _pick_tile_rows(N, C, x_isz, t_isz, row_mult, vmem_limit)
    else:
        tile_rows = max(row_mult, _round_up(int(tile_rows), row_mult))

    n_pad = _round_up(N, tile_rows)
    if n_pad != N:
        pad = ((0, n_pad - N), (0, 0))
        # zero target rows contribute exactly 0 loss; zero logits stay finite
        x = jnp.pad(x, pad)
        target = jnp.pad(target, pad)

    grid = (n_pad // tile_rows,)

    row_loss = pl.pallas_call(
        _soft_ce_kernel,
        out_shape=jax.ShapeDtypeStruct((n_pad, 1), jnp.float32),
        grid=grid,
        in_specs=[
            pl.BlockSpec((tile_rows, C), lambda i: (i, 0)),
            pl.BlockSpec((tile_rows, C), lambda i: (i, 0)),
        ],
        out_specs=pl.BlockSpec((tile_rows, 1), lambda i: (i, 0)),
        compiler_params=pltpu.CompilerParams(
            dimension_semantics=("parallel",),
            vmem_limit_bytes=vmem_limit,
        ),
    )(x, target)

    if reduction == "mean":
        return jnp.sum(row_loss) / N
    elif reduction == "sum":
        return jnp.sum(row_loss)
    elif reduction == "none":
        return row_loss[:N, 0]
    else:
        raise ValueError(f"unknown reduction: {reduction}")


def _reference(x, target, reduction="mean"):
    logp = jax.nn.log_softmax(x.astype(jnp.float32), axis=-1)
    loss = jnp.sum(-target.astype(jnp.float32) * logp, axis=-1)
    if reduction == "mean":
        return loss.mean()
    elif reduction == "sum":
        return loss.sum()
    return loss


if __name__ == "__main__":
    key = jax.random.PRNGKey(0)
    k1, k2, k3, k4 = jax.random.split(key, 4)

    # small shapes consistent with a classification loss: (batch, num_classes)
    N, C = 16, 32
    x = jax.random.normal(k1, (N, C), dtype=jnp.float32)
    target = jax.nn.softmax(jax.random.normal(k2, (N, C), dtype=jnp.float32), axis=-1)

    out_mean = soft_target_cross_entropy(x, target, reduction="mean")
    jax.block_until_ready(out_mean)

    out_sum = soft_target_cross_entropy(x, target, reduction="sum")
    out_none = soft_target_cross_entropy(x, target, reduction="none")
    # explicit small tile -> exercises the multi-step parallel grid path
    out_sum_tiled = soft_target_cross_entropy(x, target, reduction="sum", tile_rows=8)

    # ragged N -> exercises zero-padding of the last tile
    Nr = 10
    xr = jax.random.normal(k3, (Nr, C), dtype=jnp.float32)
    tr = jax.nn.softmax(jax.random.normal(k4, (Nr, C), dtype=jnp.float32), axis=-1)
    out_ragged = soft_target_cross_entropy(xr, tr, reduction="mean")

    # bf16 inputs stay bf16 on the wire; f32 math happens inside the kernel
    xb = x.astype(jnp.bfloat16)
    tb = target.astype(jnp.bfloat16)
    out_bf16 = soft_target_cross_entropy(xb, tb, reduction="mean")

    jax.block_until_ready((out_sum, out_none, out_sum_tiled, out_ragged, out_bf16))

    # correctness checks against pure-JAX reference
    assert jnp.allclose(out_mean, _reference(x, target, "mean"), atol=1e-5, rtol=1e-5)
    assert jnp.allclose(out_sum, _reference(x, target, "sum"), atol=1e-4, rtol=1e-5)
    assert jnp.allclose(out_none, _reference(x, target, "none"), atol=1e-5, rtol=1e-5)
    assert jnp.allclose(out_sum_tiled, _reference(x, target, "sum"), atol=1e-4, rtol=1e-5)
    assert jnp.allclose(out_ragged, _reference(xr, tr, "mean"), atol=1e-5, rtol=1e-5)
    assert jnp.allclose(out_bf16, _reference(xb, tb, "mean"), atol=2e-5, rtol=2e-5)

    print("KERNEL_OK")
</pallas_src>

<mosaic_0001>
module attributes {stable_mosaic.version = 11 : i64} {
  func.func @_soft_ce_kernel(%arg0: i32, %arg1: memref<16x32xf32, #tpu.memory_space<vmem>>, %arg2: memref<16x32xf32, #tpu.memory_space<vmem>>, %arg3: memref<16x1xf32, #tpu.memory_space<vmem>>) attributes {dimension_semantics = [#tpu.dimension_semantics<parallel>], iteration_bounds = array<i64: 1>, scalar_prefetch = 0 : i64, scratch_operands = 0 : i64, tpu.core_type = #tpu.core_type<tc>, window_params = [{transform_indices = @transform_0, window_bounds = array<i64: 16, 32>}, {transform_indices = @transform_1, window_bounds = array<i64: 16, 32>}, {transform_indices = @transform_2, window_bounds = array<i64: 16, 1>}]} {
    %c0 = arith.constant 0 : index
    %c0_0 = arith.constant 0 : index
    %0 = vector.load %arg1[%c0, %c0_0] : memref<16x32xf32, #tpu.memory_space<vmem>>, vector<16x32xf32>
    %c0_1 = arith.constant 0 : index
    %c0_2 = arith.constant 0 : index
    %1 = vector.load %arg2[%c0_1, %c0_2] : memref<16x32xf32, #tpu.memory_space<vmem>>, vector<16x32xf32>
    %cst = arith.constant dense<0xFF800000> : vector<16xf32>
    %2 = vector.multi_reduction <maximumf>, %0, %cst [1] : vector<16x32xf32> to vector<16xf32>
    %3 = vector.shape_cast %2 : vector<16xf32> to vector<16x1xf32>
    %4 = vector.broadcast %3 : vector<16x1xf32> to vector<16x32xf32>
    %5 = arith.subf %0, %4 : vector<16x32xf32>
    %6 = math.exp %5 : vector<16x32xf32>
    %cst_3 = arith.constant dense<0.000000e+00> : vector<16xf32>
    %7 = vector.multi_reduction <add>, %6, %cst_3 [1] : vector<16x32xf32> to vector<16xf32>
    %8 = vector.shape_cast %7 : vector<16xf32> to vector<16x1xf32>
    %9 = math.log %8 : vector<16x1xf32>
    %10 = vector.broadcast %9 : vector<16x1xf32> to vector<16x32xf32>
    %11 = arith.subf %5, %10 : vector<16x32xf32>
    %cst_4 = arith.constant 0.000000e+00 : f32
    %12 = vector.broadcast %cst_4 : f32 to vector<16x32xf32>
    %13 = arith.subf %12, %1 : vector<16x32xf32>
    %14 = arith.mulf %13, %11 : vector<16x32xf32>
    %cst_5 = arith.constant dense<0.000000e+00> : vector<16xf32>
    %15 = vector.multi_reduction <add>, %14, %cst_5 [1] : vector<16x32xf32> to vector<16xf32>
    %16 = vector.shape_cast %15 : vector<16xf32> to vector<16x1xf32>
    %c0_6 = arith.constant 0 : index
    %c0_7 = arith.constant 0 : index
    %17 = vector.load %arg3[%c0_6, %c0_7] : memref<16x1xf32, #tpu.memory_space<vmem>>, vector<16x1xf32>
    tpu.vector_store %arg3[%c0_6, %c0_7], %16 {strides = array<i32>} : memref<16x1xf32, #tpu.memory_space<vmem>>, vector<16x1xf32>,
    return
  }
  func.func @transform_0(%arg0: i32) -> (i32, i32) {
    %c0_i32 = arith.constant 0 : i32
    %c0_i32_0 = arith.constant 0 : i32
    return %arg0, %c0_i32 : i32, i32
  }
  func.func @transform_1(%arg0: i32) -> (i32, i32) {
    %c0_i32 = arith.constant 0 : i32
    %c0_i32_0 = arith.constant 0 : i32
    return %arg0, %c0_i32 : i32, i32
  }
  func.func @transform_2(%arg0: i32) -> (i32, i32) {
    %c0_i32 = arith.constant 0 : i32
    %c0_i32_0 = arith.constant 0 : i32
    return %arg0, %c0_i32 : i32, i32
  }
}

</mosaic_0001>

<llo_original>
// kernel: soft_target_cross_entropy.1
$region0: #{soft_target_cross_entropy.1}
  #allocation0 [shape = 'u32[]', space=smem, size = 0x4, offset = 0x4, fixed_abs, tag = 'smem constant byte address 0x4 - core index']
  #allocation1 [shape = 'u32[144,128]{1,0:T(1,128)}', space=vmem, size = 0x12000, scoped, tag = 'internal scratch']
  %s0 = inlined_call_operand.hbm [shape: f32[16,32], index: 0, kind: input, shape index: {}]
  %s1 = inlined_call_operand.hbm [shape: f32[16,32], index: 1, kind: input, shape index: {}]
  %s2 = inlined_call_operand.vmem [shape: f32[16,1], index: 2, kind: output, shape index: {}]
  %s3 = sld [smem:[#allocation0]]
  $region26: #{soft_target_cross_entropy.1} parent=0
    _
  %s5 = ssub.s32 1, %s3
  %s6 = scalar_select 0, %s5, %s3
  $region1: #{soft_target_cross_entropy.1} parent=0
    #allocation2 [shape = 'u8[8192]{0}', space=vmem, size = 0x2000, scoped, tag = 'input window, operand 0, single buffered']
    #allocation3 [shape = 's32[1]{0}', space=sflag, size = 0x4, scoped, tag = 'scoped memory for soft_target_cross_entropy.1']
    #allocation4 [shape = 'u8[8192]{0}', space=vmem, size = 0x2000, scoped, tag = 'input window, operand 1, single buffered']
    #allocation5 [shape = 's32[1]{0}', space=sflag, size = 0x4, scoped, tag = 'scoped memory for soft_target_cross_entropy.1']
    %7 = vsyncpa [#allocation3], 0
    %8 = vsyncpa [#allocation5], 0
    // Predicated region
    $region2: #{soft_target_cross_entropy.1} parent=1 // pred_check
      _
    $region3: #{soft_target_cross_entropy.1} parent=1 // pred_check_branch
      %10 = sbr.rel (0) target = $region5
    $region4: #{soft_target_cross_entropy.1} parent=1 // pred_region
      %s12 = ssub.s32 256, 256
      %13 = vsyncadd [#allocation3], %s12
      %s14 = sshll.u32 [#allocation2], 4
      %s15 = int_to_ptr.vmem [resolvable:$true] %s14
      %20 = dma.hbm_to_vmem [thread:$0]  %s0, 256, %s15, [#allocation3], 128, 128, 8
    $region5: #{soft_target_cross_entropy.1} parent=1 // pred_fallthru
      _
    // Predicated region
    $region6: #{soft_target_cross_entropy.1} parent=1 // pred_check
      _
    $region7: #{soft_target_cross_entropy.1} parent=1 // pred_check_branch
      %22 = sbr.rel (0) target = $region9
    $region8: #{soft_target_cross_entropy.1} parent=1 // pred_region
      %s24 = ssub.s32 256, 256
      %25 = vsyncadd [#allocation5], %s24
      %s26 = sshll.u32 [#allocation4], 4
      %s27 = int_to_ptr.vmem [resolvable:$true] %s26
      %32 = dma.hbm_to_vmem [thread:$0]  %s1, 256, %s27, [#allocation5], 128, 128, 8
    $region9: #{soft_target_cross_entropy.1} parent=1 // pred_fallthru
      _
    // Predicated region
    $region10: #{soft_target_cross_entropy.1} parent=1 // pred_check
      _
    $region11: #{soft_target_cross_entropy.1} parent=1 // pred_check_branch
      %34 = sbr.rel (0) target = $region13
    $region12: #{soft_target_cross_entropy.1} parent=1 // pred_region
      %35 = dma.done [#allocation3], 256
    $region13: #{soft_target_cross_entropy.1} parent=1 // pred_fallthru
      _
    // Predicated region
    $region14: #{soft_target_cross_entropy.1} parent=1 // pred_check
      _
    $region15: #{soft_target_cross_entropy.1} parent=1 // pred_check_branch
      %37 = sbr.rel (0) target = $region17
    $region16: #{soft_target_cross_entropy.1} parent=1 // pred_region
      %38 = dma.done [#allocation5], 256
    $region17: #{soft_target_cross_entropy.1} parent=1 // pred_fallthru
      _
    %v39 = vld [vmem:[#allocation2] sm:$0xff]
    %v40 = vld [vmem:[#allocation2 + $0x8] sm:$0xff]
    %v41 = vld [vmem:[#allocation4] sm:$0xff]
    %v42 = vld [vmem:[#allocation4 + $0x8] sm:$0xff]
    %vm43 = vcmask 261120
    %v44 = vsel %vm43, %v39, -inf
    %45 = vmax.xlane.f32.xlu0 %v44
    %v46 = vpop.xlane.xlu0 %45
    %v47 = vsel %vm43, %v40, -inf
    %48 = vmax.xlane.f32.xlu0 %v47
    %v49 = vpop.xlane.xlu0 %48
    %v50 = vsub.f32 %v39, %v46
    %v51 = vsub.f32 %v40, %v49
    %v52 = vmul.f32 %v50, 1.442695
    %v53 = vpow.pop %v52
    %v54 = vmul.f32 %v51, 1.442695
    %v55 = vpow.pop %v54
    %v56 = vsel %vm43, %v53, 0.0
    %57 = vadd.xlane.f32.xlu0 %v56
    %v58 = vpop.xlane.xlu0 %57
    %v59 = vsel %vm43, %v55, 0.0
    %60 = vadd.xlane.f32.xlu0 %v59
    %v61 = vpop.xlane.xlu0 %60
    %v62 = vlog2.pop %v58
    %v63 = vmul.f32 %v62, 0.6931472
    %v64 = vlog2.pop %v61
    %v65 = vmul.f32 %v64, 0.6931472
    %v66 = vsub.f32 %v50, %v63
    %v67 = vsub.f32 %v51, %v65
    %v68 = vsub.f32 0.0, %v41
    %v69 = vsub.f32 0.0, %v42
    %v70 = vmul.f32 %v68, %v66
    %v71 = vmul.f32 %v69, %v67
    %v72 = vsel %vm43, %v70, 0.0
    %73 = vadd.xlane.f32.xlu0 %v72
    %v74 = vpop.xlane.xlu0 %73
    %v75 = vsel %vm43, %v71, 0.0
    %76 = vadd.xlane.f32.xlu0 %v75
    %v77 = vpop.xlane.xlu0 %76
    %vm78 = vcmask 7168
    %79 = vst.msk [vmem:[%s2] sm:$0xff] %vm78, %v74
    %80 = vst.msk [vmem:[%s2 + $0x8] sm:$0xff] %vm78, %v77
    // Predicated region
    $region18: #{soft_target_cross_entropy.1} parent=1 // pred_check
      _
    $region19: #{soft_target_cross_entropy.1} parent=1 // pred_check_branch
      %82 = sbr.rel (0) target = $region21
    $region20: #{soft_target_cross_entropy.1} parent=1 // pred_region
      _
    $region21: #{soft_target_cross_entropy.1} parent=1 // pred_fallthru
      _
    // Predicated region
    $region22: #{soft_target_cross_entropy.1} parent=1 // pred_check
      _
    $region23: #{soft_target_cross_entropy.1} parent=1 // pred_check_branch
      %84 = sbr.rel (0) target = $region25
    $region24: #{soft_target_cross_entropy.1} parent=1 // pred_region
      _
    $region25: #{soft_target_cross_entropy.1} parent=1 // pred_fallthru
      _
    %85 = vsyncpa [#allocation3], 1
    %86 = vsyncpa [#allocation5], 1

</llo_original>
